<compile_context>
chip_gen: v5e
topology: v5e:2x2
jax: 0.10.0
libtpu: 0.0.40
codegen_flags: <defaults>
</compile_context>

<pallas_src>
import functools

import jax
import jax.numpy as jnp
import numpy as np
from jax import lax
from jax.experimental import pallas as pl
from jax.experimental.pallas import tpu as pltpu

EPS = 1e-5


def _tile_m(M, row_bytes, budget=4 << 20):
    """Largest sublane-aligned tile height that divides M and fits a VMEM budget."""
    cap = max(8, budget // max(int(row_bytes), 1))
    for t in (8192, 4096, 2048, 1024, 512, 256, 128, 64, 32, 16, 8):
        if t <= cap and M % t == 0:
            return t
    return M


# ---------------- ConvTranspose (packed quadrant matmul) + fused BN stats ----------------

def _convt_stats_kernel(x_ref, w_ref, o_ref, sum_ref, sq_ref):
    y = jnp.dot(x_ref[...], w_ref[...], preferred_element_type=jnp.float32)
    o_ref[...] = y

    @pl.when(pl.program_id(0) == 0)
    def _():
        sum_ref[...] = jnp.zeros_like(sum_ref)
        sq_ref[...] = jnp.zeros_like(sq_ref)

    sum_ref[...] += jnp.sum(y, axis=0, keepdims=True)
    sq_ref[...] += jnp.sum(y * y, axis=0, keepdims=True)


def convt_up(xf, w_packed):
    """(M, Ci) @ (Ci, 4*Co) packed ConvT weight -> raw quadrants + per-column stats."""
    M, Ci = xf.shape
    Np = w_packed.shape[1]
    tm = _tile_m(M, (Ci + 2 * Np) * 4)
    return pl.pallas_call(
        _convt_stats_kernel,
        out_shape=(
            jax.ShapeDtypeStruct((M, Np), jnp.float32),
            jax.ShapeDtypeStruct((1, Np), jnp.float32),
            jax.ShapeDtypeStruct((1, Np), jnp.float32),
        ),
        grid_spec=pltpu.PrefetchScalarGridSpec(
            num_scalar_prefetch=0,
            grid=(M // tm,),
            in_specs=[
                pl.BlockSpec((tm, Ci), lambda i: (i, 0)),
                pl.BlockSpec((Ci, Np), lambda i: (0, 0)),
            ],
            out_specs=(
                pl.BlockSpec((tm, Np), lambda i: (i, 0)),
                pl.BlockSpec((1, Np), lambda i: (0, 0)),
                pl.BlockSpec((1, Np), lambda i: (0, 0)),
            ),
        ),
        compiler_params=pltpu.CompilerParams(dimension_semantics=("arbitrary",)),
    )(xf.astype(jnp.bfloat16), w_packed.astype(jnp.bfloat16))


# ---------------- fused 3x3 conv: prologue(BN affine+ReLU) -> conv -> epilogue ----------------

def _conv3x3_kernel(*refs, H, W, Ci, Co, has_res, with_stats, pad_out):
    refs = list(refs)
    x_ref, w_ref, sc_ref, sh_ref, rm_ref = refs[:5]
    idx = 5
    res_ref = None
    if has_res:
        res_ref = refs[idx]
        idx += 1
    o_ref = refs[idx]
    idx += 1
    if with_stats:
        sum_ref, sq_ref = refs[idx], refs[idx + 1]

    Hp, Wp = H + 2, W + 2

    # --- fused prologue: previous stage's BN affine + (per-channel masked) ReLU.
    # The w-border is zeroed via the column vectors (scale=shift=0 there); the
    # h-border (padding rows) is re-zeroed here.
    x = x_ref[0]                                           # (Hp, Wp*Ci) f32
    a = x * sc_ref[...] + sh_ref[...]
    a = jnp.where(rm_ref[...] > 0.0, jnp.maximum(a, 0.0), a)
    rows = lax.broadcasted_iota(jnp.int32, (Hp, Wp * Ci), 0)
    a = jnp.where((rows >= 1) & (rows <= H), a, 0.0)

    # --- 3x3 conv as 9 shifted-window matmuls (bf16 MXU operands, f32 accumulate).
    acc = jnp.zeros((H * W, Co), jnp.float32)
    for dh in range(3):
        for dw in range(3):
            seg = a[dh:dh + H, dw * Ci:(dw + W) * Ci].reshape(H * W, Ci)
            acc = acc + jnp.dot(seg.astype(jnp.bfloat16), w_ref[dh * 3 + dw],
                                preferred_element_type=jnp.float32)

    # --- fused epilogue 1: BN statistics of this conv's output.
    if with_stats:
        @pl.when(pl.program_id(0) == 0)
        def _():
            sum_ref[...] = jnp.zeros_like(sum_ref)
            sq_ref[...] = jnp.zeros_like(sq_ref)

        sum_ref[...] += jnp.sum(acc, axis=0, keepdims=True)
        sq_ref[...] += jnp.sum(acc * acc, axis=0, keepdims=True)

    # --- fused epilogue 2: residual shortcut add (interior of a padded slab).
    if has_res:
        resid = res_ref[0][1:H + 1, Co:(W + 1) * Co].reshape(H * W, Co)
        acc = acc + resid

    out = acc.reshape(H, W * Co)
    if pad_out:                                            # emit zero-padded row slab
        zc = jnp.zeros((H, Co), jnp.float32)
        zr = jnp.zeros((1, Wp * Co), jnp.float32)
        out = jnp.concatenate([zc, out, zc], axis=1)
        out = jnp.concatenate([zr, out, zr], axis=0)
    o_ref[0] = out


def conv3x3_fused(x_pad, w9, scale_col, shift_col, relu_col, *,
                  H, W, Ci, Co, residual=None, with_stats=False, pad_out=False):
    N = x_pad.shape[0]
    Hp, Wp = H + 2, W + 2

    in_specs = [
        pl.BlockSpec((1, Hp, Wp * Ci), lambda n: (n, 0, 0)),
        pl.BlockSpec((9, Ci, Co), lambda n: (0, 0, 0)),
        pl.BlockSpec((1, Wp * Ci), lambda n: (0, 0)),
        pl.BlockSpec((1, Wp * Ci), lambda n: (0, 0)),
        pl.BlockSpec((1, Wp * Ci), lambda n: (0, 0)),
    ]
    args = [
        x_pad.astype(jnp.float32),
        w9.astype(jnp.bfloat16),
        scale_col.reshape(1, Wp * Ci).astype(jnp.float32),
        shift_col.reshape(1, Wp * Ci).astype(jnp.float32),
        relu_col.reshape(1, Wp * Ci).astype(jnp.float32),
    ]
    if residual is not None:
        in_specs.append(pl.BlockSpec((1, Hp, Wp * Co), lambda n: (n, 0, 0)))
        args.append(residual.astype(jnp.float32))

    if pad_out:
        main_shape = jax.ShapeDtypeStruct((N, Hp, Wp * Co), jnp.float32)
        main_spec = pl.BlockSpec((1, Hp, Wp * Co), lambda n: (n, 0, 0))
    else:
        main_shape = jax.ShapeDtypeStruct((N, H, W * Co), jnp.float32)
        main_spec = pl.BlockSpec((1, H, W * Co), lambda n: (n, 0, 0))

    if with_stats:
        out_shape = (main_shape,
                     jax.ShapeDtypeStruct((1, Co), jnp.float32),
                     jax.ShapeDtypeStruct((1, Co), jnp.float32))
        out_specs = (main_spec,
                     pl.BlockSpec((1, Co), lambda n: (0, 0)),
                     pl.BlockSpec((1, Co), lambda n: (0, 0)))
        dims = ("arbitrary",)
    else:
        out_shape = main_shape
        out_specs = main_spec
        dims = ("parallel",)

    kernel = functools.partial(
        _conv3x3_kernel, H=H, W=W, Ci=Ci, Co=Co,
        has_res=residual is not None, with_stats=with_stats, pad_out=pad_out)

    return pl.pallas_call(
        kernel,
        out_shape=out_shape,
        grid_spec=pltpu.PrefetchScalarGridSpec(
            num_scalar_prefetch=0,
            grid=(N,),
            in_specs=in_specs,
            out_specs=out_specs,
        ),
        compiler_params=pltpu.CompilerParams(dimension_semantics=dims),
    )(*args)


# ---------------- affine+ReLU (write padded slab) + fused next-BN stats ----------------

def _affine_relu_stats_kernel(x_ref, sc_ref, sh_ref, o_ref, sum_ref, sq_ref, *, H):
    x = x_ref[0]                                           # (Hp, Wp*C)
    a = jnp.maximum(x * sc_ref[...] + sh_ref[...], 0.0)
    rows = lax.broadcasted_iota(jnp.int32, a.shape, 0)
    a = jnp.where((rows >= 1) & (rows <= H), a, 0.0)
    o_ref[0] = a

    @pl.when(pl.program_id(0) == 0)
    def _():
        sum_ref[...] = jnp.zeros_like(sum_ref)
        sq_ref[...] = jnp.zeros_like(sq_ref)

    sum_ref[...] += jnp.sum(a, axis=0, keepdims=True)
    sq_ref[...] += jnp.sum(a * a, axis=0, keepdims=True)


def affine_relu_stats(x_pad, scale_col, shift_col, *, H, W, C):
    N = x_pad.shape[0]
    Hp, Wp = H + 2, W + 2
    out, s, sq = pl.pallas_call(
        functools.partial(_affine_relu_stats_kernel, H=H),
        out_shape=(
            jax.ShapeDtypeStruct((N, Hp, Wp * C), jnp.float32),
            jax.ShapeDtypeStruct((1, Wp * C), jnp.float32),
            jax.ShapeDtypeStruct((1, Wp * C), jnp.float32),
        ),
        grid_spec=pltpu.PrefetchScalarGridSpec(
            num_scalar_prefetch=0,
            grid=(N,),
            in_specs=[
                pl.BlockSpec((1, Hp, Wp * C), lambda n: (n, 0, 0)),
                pl.BlockSpec((1, Wp * C), lambda n: (0, 0)),
                pl.BlockSpec((1, Wp * C), lambda n: (0, 0)),
            ],
            out_specs=(
                pl.BlockSpec((1, Hp, Wp * C), lambda n: (n, 0, 0)),
                pl.BlockSpec((1, Wp * C), lambda n: (0, 0)),
                pl.BlockSpec((1, Wp * C), lambda n: (0, 0)),
            ),
        ),
        compiler_params=pltpu.CompilerParams(dimension_semantics=("arbitrary",)),
    )(x_pad.astype(jnp.float32),
      scale_col.reshape(1, Wp * C).astype(jnp.float32),
      shift_col.reshape(1, Wp * C).astype(jnp.float32))
    # fold (w, c) columns -> per-channel sums (padding contributes exactly 0)
    return out, s.reshape(Wp, C).sum(axis=0), sq.reshape(Wp, C).sum(axis=0)


# ---------------- glue (plain JAX: data movement + tiny per-channel math) ----------------

def _bn_scale_shift(s, sq, count, gamma, beta, eps=EPS):
    mean = s / count
    var = jnp.maximum(sq / count - mean * mean, 0.0)
    inv = 1.0 / jnp.sqrt(var + eps)
    scale = gamma * inv
    shift = beta - mean * scale
    return scale, shift


def _col_vectors(scale_c, shift_c, relu_c, W):
    """Tile per-channel affine vectors across the padded width; zero the w-border."""
    Wp = W + 2
    interior = ((jnp.arange(Wp) >= 1) & (jnp.arange(Wp) <= W)).astype(jnp.float32)
    scale_col = (interior[:, None] * scale_c[None, :]).reshape(-1)
    shift_col = (interior[:, None] * shift_c[None, :]).reshape(-1)
    relu_col = jnp.tile(relu_c, Wp)
    return scale_col, shift_col, relu_col


def _conv_w9(w_oihw):
    Co, Ci = w_oihw.shape[0], w_oihw.shape[1]
    return jnp.transpose(w_oihw, (2, 3, 1, 0)).reshape(9, Ci, Co)   # (kh*kw, Ci, Co)


def _pad_rows(x_nhwc):
    N, H, W, C = x_nhwc.shape
    xp = jnp.pad(x_nhwc, ((0, 0), (1, 1), (1, 1), (0, 0)))
    return xp.reshape(N, H + 2, (W + 2) * C)


def up_forward(x1_nchw, x2_nchw, p):
    f32 = jnp.float32
    x1 = jnp.transpose(x1_nchw, (0, 2, 3, 1)).astype(f32)    # (N, H, W, Cin)
    x2 = jnp.transpose(x2_nchw, (0, 2, 3, 1)).astype(f32)    # (N, 2H, 2W, Cin//2)
    N, H, W, Cin = x1.shape
    Ch = Cin // 2
    H2, W2 = 2 * H, 2 * W
    M2 = N * H2 * W2

    # --- self.up: ConvTranspose2d(Cin, Ch, 2, 2) as one packed matmul + fused BN stats.
    # Bias skipped: training-mode BN cancels a per-channel constant exactly.
    w_up = jnp.transpose(p["up_w"], (0, 2, 3, 1)).reshape(Cin, 4 * Ch)   # cols = (ki,kj,co)
    u_raw, us, usq = convt_up(x1.reshape(N * H * W, Cin), w_up)
    up_sum = us.reshape(4, Ch).sum(axis=0)
    up_sq = usq.reshape(4, Ch).sum(axis=0)
    up_scale, up_shift = _bn_scale_shift(up_sum, up_sq, M2, p["up_bn_g"], p["up_bn_b"])

    # quadrant interleave (pure data movement; BN+ReLU deferred to conv1's prologue)
    u = u_raw.reshape(N, H, W, 2, 2, Ch).transpose(0, 1, 3, 2, 4, 5).reshape(N, H2, W2, Ch)

    # --- torch.cat([x2, up(x1)], dim=1) and zero-pad once for the 3x3 conv
    xcat_p = _pad_rows(jnp.concatenate([x2, u], axis=-1))    # (N, H2+2, (W2+2)*Cin)

    # conv1 prologue: identity on x2 channels, BN-affine+ReLU on the upsampled channels
    sc_c = jnp.concatenate([jnp.ones((Ch,), f32), up_scale])
    sh_c = jnp.concatenate([jnp.zeros((Ch,), f32), up_shift])
    rl_c = jnp.concatenate([jnp.zeros((Ch,), f32), jnp.ones((Ch,), f32)])
    sc1, sh1, rl1 = _col_vectors(sc_c, sh_c, rl_c, W2)

    Cout = p["c1_w"].shape[0]
    y_raw_p, c1s, c1sq = conv3x3_fused(
        xcat_p, _conv_w9(p["c1_w"]), sc1, sh1, rl1,
        H=H2, W=W2, Ci=Cin, Co=Cout, with_stats=True, pad_out=True)
    c1_scale, c1_shift = _bn_scale_shift(c1s[0], c1sq[0], M2, p["c1_bn_g"], p["c1_bn_b"])

    # --- y = ReLU(BN(conv1)) materialized once, in padded layout, with bn1 stats fused
    sc_y, sh_y, _ = _col_vectors(c1_scale, c1_shift, jnp.ones((Cout,), f32), W2)
    y_pad, y_sum, y_sq = affine_relu_stats(y_raw_p, sc_y, sh_y, H=H2, W=W2, C=Cout)
    bn1_scale, bn1_shift = _bn_scale_shift(y_sum, y_sq, M2, p["pa_bn1_g"], p["pa_bn1_b"])

    # --- PreActBlock conv1: prologue = ReLU(BN1), epilogue = BN2 stats
    sc_a, sh_a, rl_a = _col_vectors(bn1_scale, bn1_shift, jnp.ones((Cout,), f32), W2)
    t1_raw_p, b2s, b2sq = conv3x3_fused(
        y_pad, _conv_w9(p["pa_c1_w"]), sc_a, sh_a, rl_a,
        H=H2, W=W2, Ci=Cout, Co=Cout, with_stats=True, pad_out=True)
    bn2_scale, bn2_shift = _bn_scale_shift(b2s[0], b2sq[0], M2, p["pa_bn2_g"], p["pa_bn2_b"])

    # --- PreActBlock conv2: prologue = ReLU(BN2), epilogue = + identity shortcut (y)
    sc_b, sh_b, rl_b = _col_vectors(bn2_scale, bn2_shift, jnp.ones((Cout,), f32), W2)
    out_rows = conv3x3_fused(
        t1_raw_p, _conv_w9(p["pa_c2_w"]), sc_b, sh_b, rl_b,
        H=H2, W=W2, Ci=Cout, Co=Cout, residual=y_pad, with_stats=False, pad_out=False)

    out = out_rows.reshape(N, H2, W2, Cout)
    return jnp.transpose(out, (0, 3, 1, 2))                  # back to NCHW


# ---------------- pure-JAX reference (correctness check) ----------------

def _bn_relu_ref(x, g, b, relu=True, eps=EPS):
    mean = jnp.mean(x, axis=(0, 2, 3), keepdims=True)
    var = jnp.mean((x - mean) ** 2, axis=(0, 2, 3), keepdims=True)
    y = (x - mean) / jnp.sqrt(var + eps)
    y = y * g[None, :, None, None] + b[None, :, None, None]
    return jnp.maximum(y, 0.0) if relu else y


def _conv3x3_ref(x, w, b=None):
    y = lax.conv_general_dilated(
        x, w, (1, 1), ((1, 1), (1, 1)),
        dimension_numbers=("NCHW", "OIHW", "NCHW"),
        precision=lax.Precision.HIGHEST)
    if b is not None:
        y = y + b[None, :, None, None]
    return y


def _convT_ref(x, w, b):  # ConvTranspose2d k=2 s=2 p=0, weight (Ci,Co,2,2)
    y = jnp.einsum("nihw,iokl->nohkwl", x, w, precision=lax.Precision.HIGHEST)
    N, Co, H, _, W, _ = y.shape
    return y.reshape(N, Co, 2 * H, 2 * W) + b[None, :, None, None]


def up_forward_ref(x1, x2, p):
    u = _bn_relu_ref(_convT_ref(x1, p["up_w"], p["up_b"]), p["up_bn_g"], p["up_bn_b"])
    x = jnp.concatenate([x2, u], axis=1)
    y = _bn_relu_ref(_conv3x3_ref(x, p["c1_w"], p["c1_b"]), p["c1_bn_g"], p["c1_bn_b"])
    t = _bn_relu_ref(y, p["pa_bn1_g"], p["pa_bn1_b"])
    t1 = _bn_relu_ref(_conv3x3_ref(t, p["pa_c1_w"]), p["pa_bn2_g"], p["pa_bn2_b"])
    t2 = _conv3x3_ref(t1, p["pa_c2_w"])
    return t2 + y


# ---------------- main ----------------

if __name__ == "__main__":
    key = jax.random.PRNGKey(0)
    Cin, Cout = 8, 8
    N, H, W = 2, 8, 8
    ks = jax.random.split(key, 16)

    def norm(k, shape, s=0.1):
        return s * jax.random.normal(k, shape, jnp.float32)

    params = {
        # self.up = ConvTranspose2d(Cin, Cin//2, 2, stride=2) + BN + ReLU
        "up_w": norm(ks[0], (Cin, Cin // 2, 2, 2)),
        "up_b": norm(ks[1], (Cin // 2,)),
        "up_bn_g": 1.0 + norm(ks[2], (Cin // 2,)),
        "up_bn_b": norm(ks[3], (Cin // 2,)),
        # Conv(Cin, Cout, 3, pad=1) + BN + ReLU
        "c1_w": norm(ks[4], (Cout, Cin, 3, 3)),
        "c1_b": norm(ks[5], (Cout,)),
        "c1_bn_g": 1.0 + norm(ks[6], (Cout,)),
        "c1_bn_b": norm(ks[7], (Cout,)),
        # PreActBlock(Cout, Cout): bn1, conv1(no bias), bn2, conv2(no bias)
        "pa_bn1_g": 1.0 + norm(ks[8], (Cout,)),
        "pa_bn1_b": norm(ks[9], (Cout,)),
        "pa_bn2_g": 1.0 + norm(ks[10], (Cout,)),
        "pa_bn2_b": norm(ks[11], (Cout,)),
        "pa_c1_w": norm(ks[12], (Cout, Cout, 3, 3)),
        "pa_c2_w": norm(ks[13], (Cout, Cout, 3, 3)),
    }

    x1 = jax.random.normal(ks[14], (N, Cin, H, W), jnp.float32)               # NCHW
    x2 = jax.random.normal(ks[15], (N, Cin // 2, 2 * H, 2 * W), jnp.float32)  # NCHW

    out = up_forward(x1, x2, params)
    out = jax.block_until_ready(out)

    ref = up_forward_ref(x1, x2, params)
    assert out.shape == (N, Cout, 2 * H, 2 * W)
    np.testing.assert_allclose(np.asarray(out), np.asarray(ref), rtol=5e-2, atol=5e-2)

    print("KERNEL_OK")
</pallas_src>

<mosaic_0001>
module attributes {stable_mosaic.version = 11 : i64} {
  func.func @_convt_stats_kernel(%arg0: i32, %arg1: memref<128x8xbf16, #tpu.memory_space<vmem>>, %arg2: memref<8x16xbf16, #tpu.memory_space<vmem>>, %arg3: memref<128x16xf32, #tpu.memory_space<vmem>>, %arg4: memref<1x16xf32, #tpu.memory_space<vmem>>, %arg5: memref<1x16xf32, #tpu.memory_space<vmem>>) attributes {dimension_semantics = [#tpu.dimension_semantics<arbitrary>], iteration_bounds = array<i64: 1>, scalar_prefetch = 0 : i64, scratch_operands = 0 : i64, tpu.core_type = #tpu.core_type<tc>, window_params = [{transform_indices = @transform_0, window_bounds = array<i64: 128, 8>}, {pipeline_mode = #tpu.pipeline_mode<synchronous>, transform_indices = @transform_1, window_bounds = array<i64: 8, 16>}, {transform_indices = @transform_2, window_bounds = array<i64: 128, 16>}, {pipeline_mode = #tpu.pipeline_mode<synchronous>, transform_indices = @transform_3, window_bounds = array<i64: 1, 16>}, {pipeline_mode = #tpu.pipeline_mode<synchronous>, transform_indices = @transform_4, window_bounds = array<i64: 1, 16>}]} {
    %c0 = arith.constant 0 : index
    %c0_0 = arith.constant 0 : index
    %0 = vector.load %arg1[%c0, %c0_0] : memref<128x8xbf16, #tpu.memory_space<vmem>>, vector<128x8xbf16>
    %c0_1 = arith.constant 0 : index
    %c0_2 = arith.constant 0 : index
    %1 = vector.load %arg2[%c0_1, %c0_2] : memref<8x16xbf16, #tpu.memory_space<vmem>>, vector<8x16xbf16>
    %cst = arith.constant dense<0.000000e+00> : vector<128x16xf32>
    %2 = tpu.matmul %0, %1, %cst {dimension_numbers = #tpu.dot_dimension_numbers<[1], [0], [0], [1], [0, 0, 1, 1], [], []>} : vector<128x8xbf16>, vector<8x16xbf16>, vector<128x16xf32> -> vector<128x16xf32>
    %c0_3 = arith.constant 0 : index
    %c0_4 = arith.constant 0 : index
    %3 = vector.load %arg3[%c0_3, %c0_4] : memref<128x16xf32, #tpu.memory_space<vmem>>, vector<128x16xf32>
    tpu.vector_store %arg3[%c0_3, %c0_4], %2 {strides = array<i32>} : memref<128x16xf32, #tpu.memory_space<vmem>>, vector<128x16xf32>,
    %c0_i32 = arith.constant 0 : i32
    %4 = arith.cmpi eq, %arg0, %c0_i32 : i32
    %5 = arith.extui %4 : i1 to i32
    %c0_i32_5 = arith.constant 0 : i32
    %6 = arith.cmpi ne, %5, %c0_i32_5 : i32
    scf.if %6 {
      %cst_16 = arith.constant 0.000000e+00 : f32
      %18 = vector.broadcast %cst_16 : f32 to vector<1x16xf32>
      %c0_17 = arith.constant 0 : index
      %c0_18 = arith.constant 0 : index
      %19 = vector.load %arg4[%c0_17, %c0_18] : memref<1x16xf32, #tpu.memory_space<vmem>>, vector<1x16xf32>
      tpu.vector_store %arg4[%c0_17, %c0_18], %18 {strides = array<i32>} : memref<1x16xf32, #tpu.memory_space<vmem>>, vector<1x16xf32>,
      %cst_19 = arith.constant 0.000000e+00 : f32
      %20 = vector.broadcast %cst_19 : f32 to vector<1x16xf32>
      %c0_20 = arith.constant 0 : index
      %c0_21 = arith.constant 0 : index
      %21 = vector.load %arg5[%c0_20, %c0_21] : memref<1x16xf32, #tpu.memory_space<vmem>>, vector<1x16xf32>
      tpu.vector_store %arg5[%c0_20, %c0_21], %20 {strides = array<i32>} : memref<1x16xf32, #tpu.memory_space<vmem>>, vector<1x16xf32>,
    } else {
    }
    %c0_6 = arith.constant 0 : index
    %c0_7 = arith.constant 0 : index
    %7 = vector.load %arg4[%c0_6, %c0_7] : memref<1x16xf32, #tpu.memory_space<vmem>>, vector<1x16xf32>
    %cst_8 = arith.constant dense<0.000000e+00> : vector<16xf32>
    %8 = vector.multi_reduction <add>, %2, %cst_8 [0] : vector<128x16xf32> to vector<16xf32>
    %9 = vector.shape_cast %8 : vector<16xf32> to vector<1x16xf32>
    %10 = arith.addf %7, %9 : vector<1x16xf32>
    %c0_9 = arith.constant 0 : index
    %c0_10 = arith.constant 0 : index
    %11 = vector.load %arg4[%c0_9, %c0_10] : memref<1x16xf32, #tpu.memory_space<vmem>>, vector<1x16xf32>
    tpu.vector_store %arg4[%c0_9, %c0_10], %10 {strides = array<i32>} : memref<1x16xf32, #tpu.memory_space<vmem>>, vector<1x16xf32>,
    %c0_11 = arith.constant 0 : index
    %c0_12 = arith.constant 0 : index
    %12 = vector.load %arg5[%c0_11, %c0_12] : memref<1x16xf32, #tpu.memory_space<vmem>>, vector<1x16xf32>
    %13 = arith.mulf %2, %2 : vector<128x16xf32>
    %cst_13 = arith.constant dense<0.000000e+00> : vector<16xf32>
    %14 = vector.multi_reduction <add>, %13, %cst_13 [0] : vector<128x16xf32> to vector<16xf32>
    %15 = vector.shape_cast %14 : vector<16xf32> to vector<1x16xf32>
    %16 = arith.addf %12, %15 : vector<1x16xf32>
    %c0_14 = arith.constant 0 : index
    %c0_15 = arith.constant 0 : index
    %17 = vector.load %arg5[%c0_14, %c0_15] : memref<1x16xf32, #tpu.memory_space<vmem>>, vector<1x16xf32>
    tpu.vector_store %arg5[%c0_14, %c0_15], %16 {strides = array<i32>} : memref<1x16xf32, #tpu.memory_space<vmem>>, vector<1x16xf32>,
    return
  }
  func.func @transform_0(%arg0: i32) -> (i32, i32) {
    %c0_i32 = arith.constant 0 : i32
    %c0_i32_0 = arith.constant 0 : i32
    return %arg0, %c0_i32 : i32, i32
  }
  func.func @transform_1(%arg0: i32) -> (i32, i32) {
    %c0_i32 = arith.constant 0 : i32
    %c0_i32_0 = arith.constant 0 : i32
    %c0_i32_1 = arith.constant 0 : i32
    return %c0_i32, %c0_i32_0 : i32, i32
  }
  func.func @transform_2(%arg0: i32) -> (i32, i32) {
    %c0_i32 = arith.constant 0 : i32
    %c0_i32_0 = arith.constant 0 : i32
    return %arg0, %c0_i32 : i32, i32
  }
  func.func @transform_3(%arg0: i32) -> (i32, i32) {
    %c0_i32 = arith.constant 0 : i32
    %c0_i32_0 = arith.constant 0 : i32
    %c0_i32_1 = arith.constant 0 : i32
    return %c0_i32, %c0_i32_0 : i32, i32
  }
  func.func @transform_4(%arg0: i32) -> (i32, i32) {
    %c0_i32 = arith.constant 0 : i32
    %c0_i32_0 = arith.constant 0 : i32
    %c0_i32_1 = arith.constant 0 : i32
    return %c0_i32, %c0_i32_0 : i32, i32
  }
}

</mosaic_0001>

<llo_original>
// kernel: tpu_custom_call.1
$region0: #{tpu_custom_call.1}
  #allocation0 [shape = 'u32[]', space=smem, size = 0x4, offset = 0x4, fixed_abs, tag = 'smem constant byte address 0x4 - core index']
  #allocation1 [shape = 'u32[72,128]{1,0:T(1,128)}', space=vmem, size = 0x9000, scoped, tag = 'internal scratch']
  %s0 = inlined_call_operand.vmem [shape: bf16[128,8], index: 0, kind: input, shape index: {}]
  %s1 = inlined_call_operand.vmem [shape: bf16[8,16], index: 1, kind: input, shape index: {}]
  %s2 = inlined_call_operand.vmem [shape: f32[128,16], index: 2, kind: output, shape index: {0}]
  %s3 = inlined_call_operand.hbm [shape: f32[1,16], index: 3, kind: output, shape index: {1}]
  %s4 = inlined_call_operand.hbm [shape: f32[1,16], index: 4, kind: output, shape index: {2}]
  %5 = xla_tuple %s2, %s3, %s4
  %s6 = sld [smem:[#allocation0]]
  $region38: #{tpu_custom_call.1} parent=0
    _
  %s8 = ssub.s32 1, %s6
  %s9 = scalar_select 0, %s8, %s6
  $region1: #{tpu_custom_call.1} parent=0
    #allocation2 [shape = 'u8[512]{0}', space=vmem, size = 0x400, scoped, tag = 'output window, operand 1, single buffered']
    #allocation3 [shape = 's32[1]{0}', space=sflag, size = 0x4, scoped, tag = 'scoped memory for tpu_custom_call.1']
    #allocation4 [shape = 'u8[512]{0}', space=vmem, size = 0x400, scoped, tag = 'output window, operand 2, single buffered']
    #allocation5 [shape = 's32[1]{0}', space=sflag, size = 0x4, scoped, tag = 'scoped memory for tpu_custom_call.1']
    %10 = vsyncpa [#allocation3], 0
    %11 = vsyncpa [#allocation5], 0
    // Predicated region
    $region2: #{tpu_custom_call.1} parent=1 // pred_check
      _
    $region3: #{tpu_custom_call.1} parent=1 // pred_check_branch
      %13 = sbr.rel (0) target = $region5
    $region4: #{tpu_custom_call.1} parent=1 // pred_region
      _
    $region5: #{tpu_custom_call.1} parent=1 // pred_fallthru
      _
    // Predicated region
    $region6: #{tpu_custom_call.1} parent=1 // pred_check
      _
    $region7: #{tpu_custom_call.1} parent=1 // pred_check_branch
      %15 = sbr.rel (0) target = $region9
    $region8: #{tpu_custom_call.1} parent=1 // pred_region
      _
    $region9: #{tpu_custom_call.1} parent=1 // pred_fallthru
      _
    %v17 = vld [vmem:[%s0] sm:$0xf]
    %v18 = vld [vmem:[%s0 + $0x4] sm:$0xf]
    %v19 = vld [vmem:[%s0 + $0x8] sm:$0xf]
    %v20 = vld [vmem:[%s0 + $0xc] sm:$0xf]
    %v21 = vld [vmem:[%s0 + $0x10] sm:$0xf]
    %v22 = vld [vmem:[%s0 + $0x14] sm:$0xf]
    %v23 = vld [vmem:[%s0 + $0x18] sm:$0xf]
    %v24 = vld [vmem:[%s0 + $0x1c] sm:$0xf]
    %v25 = vld [vmem:[%s0 + $0x20] sm:$0xf]
    %v26 = vld [vmem:[%s0 + $0x24] sm:$0xf]
    %v27 = vld [vmem:[%s0 + $0x28] sm:$0xf]
    %v28 = vld [vmem:[%s0 + $0x2c] sm:$0xf]
    %v29 = vld [vmem:[%s0 + $0x30] sm:$0xf]
    %v30 = vld [vmem:[%s0 + $0x34] sm:$0xf]
    %v31 = vld [vmem:[%s0 + $0x38] sm:$0xf]
    %v32 = vld [vmem:[%s0 + $0x3c] sm:$0xf]
    %v33 = vld [vmem:[%s1] sm:$0xf]
    %v50 = vunpack.c.l.b16 %v17
    %v51 = vunpack.c.l.b16 %v18
    %v52 = vunpack.c.l.b16 %v19
    %v53 = vunpack.c.l.b16 %v20
    %v54 = vunpack.c.l.b16 %v21
    %v55 = vunpack.c.l.b16 %v22
    %v56 = vunpack.c.l.b16 %v23
    %v57 = vunpack.c.l.b16 %v24
    %v58 = vunpack.c.l.b16 %v25
    %v59 = vunpack.c.l.b16 %v26
    %v60 = vunpack.c.l.b16 %v27
    %v61 = vunpack.c.l.b16 %v28
    %v62 = vunpack.c.l.b16 %v29
    %v63 = vunpack.c.l.b16 %v30
    %v64 = vunpack.c.l.b16 %v31
    %v65 = vunpack.c.l.b16 %v32
    %v66 = vpack.c.b16 %v51, %v50
    %v67 = vpack.c.b16 %v53, %v52
    %v68 = vpack.c.b16 %v55, %v54
    %v69 = vpack.c.b16 %v57, %v56
    %v70 = vpack.c.b16 %v59, %v58
    %v71 = vpack.c.b16 %v61, %v60
    %v72 = vpack.c.b16 %v63, %v62
    %v73 = vpack.c.b16 %v65, %v64
    %vm74 = vcmask 64512
    %v76 = vsel %vm74, %v66, 0
    %v79 = vsel %vm74, %v67, 0
    %v82 = vsel %vm74, %v68, 0
    %v85 = vsel %vm74, %v69, 0
    %v88 = vsel %vm74, %v70, 0
    %v91 = vsel %vm74, %v71, 0
    %v94 = vsel %vm74, %v72, 0
    %v97 = vsel %vm74, %v73, 0
    %vm99 = vcmask 1043456
    %v101 = vsel %vm99, %v33, 0
    %103 = vmatpush.bf16.msra.mxu0 0
    %104 = vmatpush.bf16.msra.mxu0 0
    %105 = vmatpush.bf16.msra.mxu0 0
    %106 = vmatpush.bf16.msra.mxu0 0
    %107 = vmatpush.bf16.msra.mxu0 0
    %108 = vmatpush.bf16.msra.mxu0 0
    %109 = vmatpush.bf16.msra.mxu0 0
    %110 = vmatpush.bf16.msra.mxu0 %v101
    %111 = vmatmul.bf16.gmra.mxu0 %v76
    %v112 = vpop.f32.mrf.mxu0
    %v113 = vadd.f32 0.0, %v112
    %v114 = vpop.f32.mrf.mxu0
    %v115 = vadd.f32 0.0, %v114
    %116 = vmatmul.bf16.gmra.mxu0 %v79
    %v117 = vpop.f32.mrf.mxu0
    %v118 = vadd.f32 0.0, %v117
    %v119 = vpop.f32.mrf.mxu0
    %v120 = vadd.f32 0.0, %v119
    %121 = vmatmul.bf16.gmra.mxu0 %v82
    %v122 = vpop.f32.mrf.mxu0
    %v123 = vadd.f32 0.0, %v122
    %v124 = vpop.f32.mrf.mxu0
    %v125 = vadd.f32 0.0, %v124
    %126 = vmatmul.bf16.gmra.mxu0 %v85
    %v127 = vpop.f32.mrf.mxu0
    %v128 = vadd.f32 0.0, %v127
    %v129 = vpop.f32.mrf.mxu0
    %v130 = vadd.f32 0.0, %v129
    %131 = vmatmul.bf16.gmra.mxu0 %v88
    %v132 = vpop.f32.mrf.mxu0
    %v133 = vadd.f32 0.0, %v132
    %v134 = vpop.f32.mrf.mxu0
    %v135 = vadd.f32 0.0, %v134
    %136 = vmatmul.bf16.gmra.mxu0 %v91
    %v137 = vpop.f32.mrf.mxu0
    %v138 = vadd.f32 0.0, %v137
    %v139 = vpop.f32.mrf.mxu0
    %v140 = vadd.f32 0.0, %v139
    %141 = vmatmul.bf16.gmra.mxu0 %v94
    %v142 = vpop.f32.mrf.mxu0
    %v143 = vadd.f32 0.0, %v142
    %v144 = vpop.f32.mrf.mxu0
    %v145 = vadd.f32 0.0, %v144
    %146 = vmatmul.bf16.gmra.mxu0 %v97
    %v147 = vpop.f32.mrf.mxu0
    %v148 = vadd.f32 0.0, %v147
    %v149 = vpop.f32.mrf.mxu0
    %v150 = vadd.f32 0.0, %v149
    %151 = vdwg.mxu0
    %vm152 = vcmask 130048
    %153 = vst.msk [vmem:[%s2] sm:$0xff] %vm152, %v113
    %154 = vst.msk [vmem:[%s2 + $0x8] sm:$0xff] %vm152, %v115
    %155 = vst.msk [vmem:[%s2 + $0x10] sm:$0xff] %vm152, %v118
    %156 = vst.msk [vmem:[%s2 + $0x18] sm:$0xff] %vm152, %v120
    %157 = vst.msk [vmem:[%s2 + $0x20] sm:$0xff] %vm152, %v123
    %158 = vst.msk [vmem:[%s2 + $0x28] sm:$0xff] %vm152, %v125
    %159 = vst.msk [vmem:[%s2 + $0x30] sm:$0xff] %vm152, %v128
    %160 = vst.msk [vmem:[%s2 + $0x38] sm:$0xff] %vm152, %v130
    %161 = vst.msk [vmem:[%s2 + $0x40] sm:$0xff] %vm152, %v133
    %162 = vst.msk [vmem:[%s2 + $0x48] sm:$0xff] %vm152, %v135
    %163 = vst.msk [vmem:[%s2 + $0x50] sm:$0xff] %vm152, %v138
    %164 = vst.msk [vmem:[%s2 + $0x58] sm:$0xff] %vm152, %v140
    %165 = vst.msk [vmem:[%s2 + $0x60] sm:$0xff] %vm152, %v143
    %166 = vst.msk [vmem:[%s2 + $0x68] sm:$0xff] %vm152, %v145
    %167 = vst.msk [vmem:[%s2 + $0x70] sm:$0xff] %vm152, %v148
    %168 = vst.msk [vmem:[%s2 + $0x78] sm:$0xff] %vm152, %v150
    %p169 = scmp.eq.s32.totalorder 0, 0
    // Predicated region
    $region10: #{tpu_custom_call.1} parent=1 // pred_check
      %p170 = pneg %p169
    $region11: #{tpu_custom_call.1} parent=1 // pred_check_branch
      %172 = sbr.rel (%p170) target = $region13
    $region12: #{tpu_custom_call.1} parent=1 // pred_region
      %vm173 = vcmask 122880
      %174 = vst.msk [vmem:[#allocation2] sm:$0x1] %vm173, 0.0
      %175 = vst.msk [vmem:[#allocation4] sm:$0x1] %vm173, 0.0
    $region13: #{tpu_custom_call.1} parent=1 // pred_fallthru
      _
    %v176 = vld [vmem:[#allocation2] sm:$0x1]
    %v177 = vsel %vm152, %v113, 0.0
    %v178 = vsel %vm152, %v115, 0.0
    %v179 = vadd.f32 %v177, %v178
    %v180 = vsel %vm152, %v118, 0.0
    %v181 = vadd.f32 %v179, %v180
    %v182 = vsel %vm152, %v120, 0.0
    %v183 = vadd.f32 %v181, %v182
    %v184 = vsel %vm152, %v123, 0.0
    %v185 = vadd.f32 %v183, %v184
    %v186 = vsel %vm152, %v125, 0.0
    %v187 = vadd.f32 %v185, %v186
    %v188 = vsel %vm152, %v128, 0.0
    %v189 = vadd.f32 %v187, %v188
    %v190 = vsel %vm152, %v130, 0.0
    %v191 = vadd.f32 %v189, %v190
    %v192 = vsel %vm152, %v133, 0.0
    %v193 = vadd.f32 %v191, %v192
    %v194 = vsel %vm152, %v135, 0.0
    %v195 = vadd.f32 %v193, %v194
    %v196 = vsel %vm152, %v138, 0.0
    %v197 = vadd.f32 %v195, %v196
    %v198 = vsel %vm152, %v140, 0.0
    %v199 = vadd.f32 %v197, %v198
    %v200 = vsel %vm152, %v143, 0.0
    %v201 = vadd.f32 %v199, %v200
    %v202 = vsel %vm152, %v145, 0.0
    %v203 = vadd.f32 %v201, %v202
    %v204 = vsel %vm152, %v148, 0.0
    %v205 = vadd.f32 %v203, %v204
    %v206 = vsel %vm152, %v150, 0.0
    %v207 = vadd.f32 %v205, %v206
    %v208 = vrot.slane %v207, 4
    %v209 = vadd.f32 %v207, %v208
    %v210 = vrot.slane %v209, 2
    %v211 = vadd.f32 %v209, %v210
    %v212 = vrot.slane %v211, 1
    %v213 = vadd.f32 %v211, %v212
    %v214 = vadd.f32 %v176, %v213
    %vm215 = vcmask 122880
    %216 = vst.msk [vmem:[#allocation2] sm:$0x1] %vm215, %v214
    %v217 = vld [vmem:[#allocation4] sm:$0x1]
    %v218 = vmul.f32 %v113, %v113
    %v219 = vmul.f32 %v115, %v115
    %v220 = vmul.f32 %v118, %v118
    %v221 = vmul.f32 %v120, %v120
    %v222 = vmul.f32 %v123, %v123
    %v223 = vmul.f32 %v125, %v125
    %v224 = vmul.f32 %v128, %v128
    %v225 = vmul.f32 %v130, %v130
    %v226 = vmul.f32 %v133, %v133
    %v227 = vmul.f32 %v135, %v135
    %v228 = vmul.f32 %v138, %v138
    %v229 = vmul.f32 %v140, %v140
    %v230 = vmul.f32 %v143, %v143
    %v231 = vmul.f32 %v145, %v145
    %v232 = vmul.f32 %v148, %v148
    %v233 = vmul.f32 %v150, %v150
    %v234 = vsel %vm152, %v218, 0.0
    %v235 = vsel %vm152, %v219, 0.0
    %v236 = vadd.f32 %v234, %v235
    %v237 = vsel %vm152, %v220, 0.0
    %v238 = vadd.f32 %v236, %v237
    %v239 = vsel %vm152, %v221, 0.0
    %v240 = vadd.f32 %v238, %v239
    %v241 = vsel %vm152, %v222, 0.0
    %v242 = vadd.f32 %v240, %v241
    %v243 = vsel %vm152, %v223, 0.0
    %v244 = vadd.f32 %v242, %v243
    %v245 = vsel %vm152, %v224, 0.0
    %v246 = vadd.f32 %v244, %v245
    %v247 = vsel %vm152, %v225, 0.0
    %v248 = vadd.f32 %v246, %v247
    %v249 = vsel %vm152, %v226, 0.0
    %v250 = vadd.f32 %v248, %v249
    %v251 = vsel %vm152, %v227, 0.0
    %v252 = vadd.f32 %v250, %v251
    %v253 = vsel %vm152, %v228, 0.0
    %v254 = vadd.f32 %v252, %v253
    %v255 = vsel %vm152, %v229, 0.0
    %v256 = vadd.f32 %v254, %v255
    %v257 = vsel %vm152, %v230, 0.0
    %v258 = vadd.f32 %v256, %v257
    %v259 = vsel %vm152, %v231, 0.0
    %v260 = vadd.f32 %v258, %v259
    %v261 = vsel %vm152, %v232, 0.0
    %v262 = vadd.f32 %v260, %v261
    %v263 = vsel %vm152, %v233, 0.0
    %v264 = vadd.f32 %v262, %v263
    %v265 = vrot.slane %v264, 4
    %v266 = vadd.f32 %v264, %v265
    %v267 = vrot.slane %v266, 2
    %v268 = vadd.f32 %v266, %v267
    %v269 = vrot.slane %v268, 1
    %v270 = vadd.f32 %v268, %v269
    %v271 = vadd.f32 %v217, %v270
    %272 = vst.msk [vmem:[#allocation4] sm:$0x1] %vm215, %v271
    // Predicated region
    $region14: #{tpu_custom_call.1} parent=1 // pred_check
      _
    $region15: #{tpu_custom_call.1} parent=1 // pred_check_branch
      %274 = sbr.rel (0) target = $region17
    $region16: #{tpu_custom_call.1} parent=1 // pred_region
      _
    $region17: #{tpu_custom_call.1} parent=1 // pred_fallthru
      _
    // Predicated region
    $region18: #{tpu_custom_call.1} parent=1 // pred_check
      _
    $region19: #{tpu_custom_call.1} parent=1 // pred_check_branch
      %276 = sbr.rel (0) target = $region21
    $region20: #{tpu_custom_call.1} parent=1 // pred_region
      %278 = vsyncadd [#allocation3], 0
      %s280 = sshll.u32 [#allocation2], 4
      %s281 = int_to_ptr.vmem [resolvable:$true] %s280
      %s282 = sshll.u32 %s3, 4
      %s283 = int_to_ptr.hbm [resolvable:$true] %s282
      %285 = dma.vmem_to_hbm [thread:$0]  %s281, 16, %s283, [#allocation3]
    $region21: #{tpu_custom_call.1} parent=1 // pred_fallthru
      _
    // Predicated region
    $region22: #{tpu_custom_call.1} parent=1 // pred_check
      _
    $region23: #{tpu_custom_call.1} parent=1 // pred_check_branch
      %287 = sbr.rel (0) target = $region25
    $region24: #{tpu_custom_call.1} parent=1 // pred_region
      %289 = vsyncadd [#allocation5], 0
      %s291 = sshll.u32 [#allocation4], 4
      %s292 = int_to_ptr.vmem [resolvable:$true] %s291
      %s293 = sshll.u32 %s4, 4
      %s294 = int_to_ptr.hbm [resolvable:$true] %s293
      %296 = dma.vmem_to_hbm [thread:$0]  %s292, 16, %s294, [#allocation5]
    $region25: #{tpu_custom_call.1} parent=1 // pred_fallthru
      _
    // Predicated region
    $region26: #{tpu_custom_call.1} parent=1 // pred_check
      _
    $region27: #{tpu_custom_call.1} parent=1 // pred_check_branch
      %298 = sbr.rel (0) target = $region29
    $region28: #{tpu_custom_call.1} parent=1 // pred_region
      _
    $region29: #{tpu_custom_call.1} parent=1 // pred_fallthru
      _
    // Predicated region
    $region30: #{tpu_custom_call.1} parent=1 // pred_check
      _
    $region31: #{tpu_custom_call.1} parent=1 // pred_check_branch
      %300 = sbr.rel (0) target = $region33
    $region32: #{tpu_custom_call.1} parent=1 // pred_region
      %302 = dma.done [#allocation3], 16
    $region33: #{tpu_custom_call.1} parent=1 // pred_fallthru
      _
    // Predicated region
    $region34: #{tpu_custom_call.1} parent=1 // pred_check
      _
    $region35: #{tpu_custom_call.1} parent=1 // pred_check_branch
      %304 = sbr.rel (0) target = $region37
    $region36: #{tpu_custom_call.1} parent=1 // pred_region
      %306 = dma.done [#allocation5], 16
    $region37: #{tpu_custom_call.1} parent=1 // pred_fallthru
      _
    %307 = vsyncpa [#allocation3], 1
    %308 = vsyncpa [#allocation5], 1

</llo_original>
